<compile_context>
chip_gen: v7x
topology: tpu7x:2x2x1
jax: 0.10.0
libtpu: 0.0.40
codegen_flags: <defaults>
</compile_context>

<pallas_src>
import functools

import jax
import jax.numpy as jnp
from jax import lax
from jax.experimental import pallas as pl
from jax.experimental.pallas import tpu as pltpu

K_SIZE = 10
PADDING = 1
N_ITERS = 2


def _round_up(v, m):
    return -(-v // m) * m


def _sliding_window_min(a, k, axis):
    """Valid sliding-window min of width k along `axis` via prefix doubling (5 mins for k=19)."""

    def win(arr, off, length):
        idx = [slice(None)] * arr.ndim
        idx[axis] = slice(off, off + length)
        return arr[tuple(idx)]

    w = 1
    while 2 * w <= k:
        n = a.shape[axis] - w
        a = jnp.minimum(win(a, 0, n), win(a, w, n))
        w *= 2
    r = k - w                      # 0 <= r < w, so the offset-r combine leaves no gap
    if r > 0:
        n = a.shape[axis] - r
        a = jnp.minimum(win(a, 0, n), win(a, r, n))
    return a


def _erosion_kernel(x_ref, o_ref, s_ref, *, k, pad, pad_top, h, w, ws, n_slots, pad_val):
    # x_ref: (pb*G, h, w)        input planes (G consecutive planes form one lane-packed group)
    # o_ref: (pb, ho, G*ws-k+1)  lane-dense packed output (valid cols of slot g start at g*ws)
    # s_ref: (hp, G*ws)          +inf-fenced padded slab for ONE group (reused per group)
    hp, ws_total = s_ref.shape
    pb, ho = o_ref.shape[0], o_ref.shape[1]
    cdt = s_ref.dtype

    # ---- +inf ring only: regions never covered by the interior writes below.
    # Re-written every grid step (megacore-shard safe); the data interior is never inf-filled.
    if pad_top > 0:
        s_ref[0:pad_top, :] = jnp.full((pad_top, ws_total), pad_val, cdt)
    if hp - (pad_top + h) > 0:
        s_ref[pad_top + h:hp, :] = jnp.full((hp - pad_top - h, ws_total), pad_val, cdt)
    if pad > 0:
        for g in range(n_slots):
            s_ref[pad_top:pad_top + h, g * ws:g * ws + pad] = jnp.full((h, pad), pad_val, cdt)
            s_ref[pad_top:pad_top + h, g * ws + pad + w:(g + 1) * ws] = jnp.full(
                (h, pad), pad_val, cdt)

    def body(p, carry):
        # Pack the G planes of group p into their lane slots (sublane-aligned interior write).
        for g in range(n_slots):
            s_ref[pad_top:pad_top + h, g * ws + pad:g * ws + pad + w] = (
                x_ref[p * n_slots + g].astype(cdt))
        slab = s_ref[...]                                    # (hp, G*ws)
        # Separable window min: sublane (row) pass first, then lane (column) pass.
        rows = _sliding_window_min(slab, k, axis=0)          # (hp-k+1, G*ws)
        rows = rows[pad_top - pad:pad_top - pad + ho, :]     # static offset slice -> ho rows
        cols = _sliding_window_min(rows, k, axis=1)          # (ho, G*ws-k+1), lane-dense
        o_ref[p] = cols.astype(o_ref.dtype)
        return carry

    if pb <= 2:        # tiny trip count: plain unroll (full LLO scheduler visibility)
        for p in range(pb):
            body(p, 0)
    else:              # bound prefix-doubling live ranges for large blocks
        lax.fori_loop(0, pb, body, 0)


def _vmem_and_cores():
    vmem_bytes, n_cores = 64 << 20, 1          # conservative defaults (v7x-sized VMEM, 1 TC)
    try:
        info = pltpu.get_tpu_info()
        vmem_bytes = int(getattr(info, "vmem_capacity_bytes", vmem_bytes))
    except Exception:
        pass
    try:
        n_cores = int(getattr(jax.devices()[0], "num_cores", 1)) or 1
    except Exception:
        pass
    return vmem_bytes, n_cores


def _compute_dtype(x_dtype):
    """Pick the dtype of the min chain / scratch and the matching +inf pad value."""
    x_dtype = jnp.dtype(x_dtype)
    if x_dtype == jnp.dtype(jnp.bfloat16):
        kind = ""
        try:
            kind = jax.devices()[0].device_kind.lower()
        except Exception:
            pass
        # v5 has no bf16 VPU -> upcast there; v6e/v7x keep bf16 (min is exact, half the bytes).
        if "v5" in kind:
            return jnp.float32, float("inf")
        return jnp.bfloat16, float("inf")
    if jnp.issubdtype(x_dtype, jnp.integer):
        return jnp.int32, int(jnp.iinfo(jnp.int32).max)   # exact (f32 rounds |v| > 2^24)
    return jnp.float32, float("inf")


def _choose_blocking(nc, h, w, ho, wo, ws, hp, in_isz, out_isz, c_isz):
    # Lane-packing factor: smallest G giving a >=128-lane packed output, capped by nc.
    g = min(max(1, pl.cdiv(128, wo)), max(1, nc))
    vmem_bytes, n_cores = _vmem_and_cores()
    budget = vmem_bytes // 3               # block-sizing budget, well under the scoped limit
    vmem_limit = (vmem_bytes * 3) // 4     # explicit scoped-VMEM limit handed to the compiler

    def footprint(g_, pb_):
        # (8,128)-tile-padded VMEM bytes: double-buffered in/out blocks + one scratch slab.
        inp = 2 * pb_ * g_ * _round_up(h, 8) * _round_up(w, 128) * in_isz
        out = 2 * pb_ * _round_up(ho, 8) * _round_up(g_ * ws - (ws - wo), 128) * out_isz
        scr = _round_up(hp, 8) * _round_up(g_ * ws, 128) * c_isz
        return inp + out + scr

    while g > 1 and footprint(g, 1) > budget:
        g -= 1
    ncg = pl.cdiv(nc, g)                   # plane groups (before padding to a multiple of pb)
    pb = 1
    while pb < ncg and footprint(g, pb + 1) <= budget:
        pb += 1
    if n_cores >= 2 and ncg >= 2:          # keep >=2 grid steps only when there are 2 TCs
        pb = min(pb, max(1, ncg // 2))
    return g, pb, ncg, vmem_limit


def erosion(x, *, n_iters=N_ITERS, k_size=K_SIZE, padding=PADDING):
    """Erosion.forward(x) == -(MaxPool2d(k_size, stride=1, padding) applied n_iters times)(-x)."""
    n, c, h, w = x.shape
    # n_iters stride-1 min-pools with +inf padding compose exactly into one larger pool.
    k = n_iters * (k_size - 1) + 1
    pad = n_iters * padding
    ho = h + 2 * pad - k + 1
    wo = w + 2 * pad - k + 1
    assert ho > 0 and wo > 0, "spatial size too small for this kernel size"

    ws = w + 2 * pad                                   # lane-slot width of one padded plane
    pad_top = _round_up(pad, 8) if pad > 0 else 0      # sublane-aligned interior writes
    hp = _round_up(pad_top + h + pad, 8)               # slab rows (extra +inf rows harmless)

    cdtype, pad_val = _compute_dtype(x.dtype)
    nc = n * c
    in_isz = jnp.dtype(x.dtype).itemsize
    c_isz = jnp.dtype(cdtype).itemsize
    g, pb, ncg, vmem_limit = _choose_blocking(nc, h, w, ho, wo, ws, hp, in_isz, in_isz, c_isz)

    ncg_pad = _round_up(ncg, pb)
    nc_pad = ncg_pad * g
    x3 = x.reshape(nc, h, w)
    if nc_pad > nc:                                    # dummy planes; outputs discarded below
        x3 = jnp.concatenate([x3, jnp.zeros((nc_pad - nc, h, w), x.dtype)], axis=0)

    wout = g * ws - k + 1                              # packed (lane-dense) output width
    kernel = functools.partial(
        _erosion_kernel, k=k, pad=pad, pad_top=pad_top, h=h, w=w, ws=ws,
        n_slots=g, pad_val=pad_val)

    out_packed = pl.pallas_call(
        kernel,
        out_shape=jax.ShapeDtypeStruct((ncg_pad, ho, wout), x.dtype),
        grid_spec=pltpu.PrefetchScalarGridSpec(
            num_scalar_prefetch=0,
            grid=(ncg_pad // pb,),
            in_specs=[pl.BlockSpec((pb * g, h, w), lambda i: (i, 0, 0))],
            out_specs=pl.BlockSpec((pb, ho, wout), lambda i: (i, 0, 0)),
            scratch_shapes=[pltpu.VMEM((hp, g * ws), cdtype)],
        ),
        compiler_params=pltpu.CompilerParams(
            dimension_semantics=("parallel",),
            vmem_limit_bytes=int(vmem_limit),
        ),
    )(x3)

    # Unpack the lane-packed slab: plane (grp*g + s) lives in lanes [s*ws, s*ws + wo).
    out = jnp.stack([out_packed[:, :, s * ws:s * ws + wo] for s in range(g)], axis=1)
    out = out.reshape(ncg_pad * g, ho, wo)[:nc]
    return out.reshape(n, c, ho, wo)


def _erosion_reference(x, *, n_iters=N_ITERS, k_size=K_SIZE, padding=PADDING):
    # Pure-JAX reference matching PyTorch -MaxPool2d(-x): iterative min-pool with +inf padding
    # (also validates the iteration-fusion claim used by the kernel).
    for _ in range(n_iters):
        x = lax.reduce_window(
            x,
            jnp.inf,
            lax.min,
            window_dimensions=(1, 1, k_size, k_size),
            window_strides=(1, 1, 1, 1),
            padding=((0, 0), (0, 0), (padding, padding), (padding, padding)),
        )
    return x


if __name__ == "__main__":
    key = jax.random.PRNGKey(0)
    # Small NCHW input; 32x32 -> 18x18 after the fused two-iteration erosion.
    x = jax.random.normal(key, (2, 4, 32, 32), dtype=jnp.float32)

    out = jax.block_until_ready(jax.jit(erosion)(x))

    ref = _erosion_reference(x)
    assert out.shape == ref.shape == (2, 4, 18, 18), out.shape
    assert jnp.allclose(out, ref, atol=1e-6, rtol=1e-6)

    print("KERNEL_OK")
</pallas_src>

<mosaic_0001>
module attributes {stable_mosaic.version = 11 : i64} {
  func.func @_erosion_kernel(%arg0: i32, %arg1: memref<8x32x32xf32, #tpu.memory_space<vmem>>, %arg2: memref<1x18x270xf32, #tpu.memory_space<vmem>>, %arg3: memref<48x288xf32, #tpu.memory_space<vmem>>) attributes {dimension_semantics = [#tpu.dimension_semantics<parallel>], iteration_bounds = array<i64: 1>, scalar_prefetch = 0 : i64, scratch_operands = 1 : i64, tpu.core_type = #tpu.core_type<tc>, window_params = [{transform_indices = @transform_0, window_bounds = array<i64: 8, 32, 32>}, {transform_indices = @transform_1, window_bounds = array<i64: 1, 18, 270>}]} {
    %cst = arith.constant 0x7F800000 : f32
    %0 = vector.broadcast %cst : f32 to vector<8x288xf32>
    %c0 = arith.constant 0 : index
    %c0_0 = arith.constant 0 : index
    %1 = vector.load %arg3[%c0, %c0_0] : memref<48x288xf32, #tpu.memory_space<vmem>>, vector<8x288xf32>
    tpu.vector_store %arg3[%c0, %c0_0], %0 {strides = array<i32>} : memref<48x288xf32, #tpu.memory_space<vmem>>, vector<8x288xf32>,
    %cst_1 = arith.constant 0x7F800000 : f32
    %2 = vector.broadcast %cst_1 : f32 to vector<8x288xf32>
    %c40 = arith.constant 40 : index
    %c0_2 = arith.constant 0 : index
    %3 = vector.load %arg3[%c40, %c0_2] : memref<48x288xf32, #tpu.memory_space<vmem>>, vector<8x288xf32>
    tpu.vector_store %arg3[%c40, %c0_2], %2 {strides = array<i32>} : memref<48x288xf32, #tpu.memory_space<vmem>>, vector<8x288xf32>,
    %cst_3 = arith.constant 0x7F800000 : f32
    %4 = vector.broadcast %cst_3 : f32 to vector<32x2xf32>
    %c8 = arith.constant 8 : index
    %c0_4 = arith.constant 0 : index
    %5 = vector.load %arg3[%c8, %c0_4] : memref<48x288xf32, #tpu.memory_space<vmem>>, vector<32x2xf32>
    tpu.vector_store %arg3[%c8, %c0_4], %4 {strides = array<i32>} : memref<48x288xf32, #tpu.memory_space<vmem>>, vector<32x2xf32>,
    %cst_5 = arith.constant 0x7F800000 : f32
    %6 = vector.broadcast %cst_5 : f32 to vector<32x2xf32>
    %c8_6 = arith.constant 8 : index
    %c34 = arith.constant 34 : index
    %7 = vector.load %arg3[%c8_6, %c34] : memref<48x288xf32, #tpu.memory_space<vmem>>, vector<32x2xf32>
    tpu.vector_store %arg3[%c8_6, %c34], %6 {strides = array<i32>} : memref<48x288xf32, #tpu.memory_space<vmem>>, vector<32x2xf32>,
    %cst_7 = arith.constant 0x7F800000 : f32
    %8 = vector.broadcast %cst_7 : f32 to vector<32x2xf32>
    %c8_8 = arith.constant 8 : index
    %c36 = arith.constant 36 : index
    %9 = vector.load %arg3[%c8_8, %c36] : memref<48x288xf32, #tpu.memory_space<vmem>>, vector<32x2xf32>
    tpu.vector_store %arg3[%c8_8, %c36], %8 {strides = array<i32>} : memref<48x288xf32, #tpu.memory_space<vmem>>, vector<32x2xf32>,
    %cst_9 = arith.constant 0x7F800000 : f32
    %10 = vector.broadcast %cst_9 : f32 to vector<32x2xf32>
    %c8_10 = arith.constant 8 : index
    %c70 = arith.constant 70 : index
    %11 = vector.load %arg3[%c8_10, %c70] : memref<48x288xf32, #tpu.memory_space<vmem>>, vector<32x2xf32>
    tpu.vector_store %arg3[%c8_10, %c70], %10 {strides = array<i32>} : memref<48x288xf32, #tpu.memory_space<vmem>>, vector<32x2xf32>,
    %cst_11 = arith.constant 0x7F800000 : f32
    %12 = vector.broadcast %cst_11 : f32 to vector<32x2xf32>
    %c8_12 = arith.constant 8 : index
    %c72 = arith.constant 72 : index
    %13 = vector.load %arg3[%c8_12, %c72] : memref<48x288xf32, #tpu.memory_space<vmem>>, vector<32x2xf32>
    tpu.vector_store %arg3[%c8_12, %c72], %12 {strides = array<i32>} : memref<48x288xf32, #tpu.memory_space<vmem>>, vector<32x2xf32>,
    %cst_13 = arith.constant 0x7F800000 : f32
    %14 = vector.broadcast %cst_13 : f32 to vector<32x2xf32>
    %c8_14 = arith.constant 8 : index
    %c106 = arith.constant 106 : index
    %15 = vector.load %arg3[%c8_14, %c106] : memref<48x288xf32, #tpu.memory_space<vmem>>, vector<32x2xf32>
    tpu.vector_store %arg3[%c8_14, %c106], %14 {strides = array<i32>} : memref<48x288xf32, #tpu.memory_space<vmem>>, vector<32x2xf32>,
    %cst_15 = arith.constant 0x7F800000 : f32
    %16 = vector.broadcast %cst_15 : f32 to vector<32x2xf32>
    %c8_16 = arith.constant 8 : index
    %c108 = arith.constant 108 : index
    %17 = vector.load %arg3[%c8_16, %c108] : memref<48x288xf32, #tpu.memory_space<vmem>>, vector<32x2xf32>
    tpu.vector_store %arg3[%c8_16, %c108], %16 {strides = array<i32>} : memref<48x288xf32, #tpu.memory_space<vmem>>, vector<32x2xf32>,
    %cst_17 = arith.constant 0x7F800000 : f32
    %18 = vector.broadcast %cst_17 : f32 to vector<32x2xf32>
    %c8_18 = arith.constant 8 : index
    %c142 = arith.constant 142 : index
    %19 = vector.load %arg3[%c8_18, %c142] : memref<48x288xf32, #tpu.memory_space<vmem>>, vector<32x2xf32>
    tpu.vector_store %arg3[%c8_18, %c142], %18 {strides = array<i32>} : memref<48x288xf32, #tpu.memory_space<vmem>>, vector<32x2xf32>,
    %cst_19 = arith.constant 0x7F800000 : f32
    %20 = vector.broadcast %cst_19 : f32 to vector<32x2xf32>
    %c8_20 = arith.constant 8 : index
    %c144 = arith.constant 144 : index
    %21 = vector.load %arg3[%c8_20, %c144] : memref<48x288xf32, #tpu.memory_space<vmem>>, vector<32x2xf32>
    tpu.vector_store %arg3[%c8_20, %c144], %20 {strides = array<i32>} : memref<48x288xf32, #tpu.memory_space<vmem>>, vector<32x2xf32>,
    %cst_21 = arith.constant 0x7F800000 : f32
    %22 = vector.broadcast %cst_21 : f32 to vector<32x2xf32>
    %c8_22 = arith.constant 8 : index
    %c178 = arith.constant 178 : index
    %23 = vector.load %arg3[%c8_22, %c178] : memref<48x288xf32, #tpu.memory_space<vmem>>, vector<32x2xf32>
    tpu.vector_store %arg3[%c8_22, %c178], %22 {strides = array<i32>} : memref<48x288xf32, #tpu.memory_space<vmem>>, vector<32x2xf32>,
    %cst_23 = arith.constant 0x7F800000 : f32
    %24 = vector.broadcast %cst_23 : f32 to vector<32x2xf32>
    %c8_24 = arith.constant 8 : index
    %c180 = arith.constant 180 : index
    %25 = vector.load %arg3[%c8_24, %c180] : memref<48x288xf32, #tpu.memory_space<vmem>>, vector<32x2xf32>
    tpu.vector_store %arg3[%c8_24, %c180], %24 {strides = array<i32>} : memref<48x288xf32, #tpu.memory_space<vmem>>, vector<32x2xf32>,
    %cst_25 = arith.constant 0x7F800000 : f32
    %26 = vector.broadcast %cst_25 : f32 to vector<32x2xf32>
    %c8_26 = arith.constant 8 : index
    %c214 = arith.constant 214 : index
    %27 = vector.load %arg3[%c8_26, %c214] : memref<48x288xf32, #tpu.memory_space<vmem>>, vector<32x2xf32>
    tpu.vector_store %arg3[%c8_26, %c214], %26 {strides = array<i32>} : memref<48x288xf32, #tpu.memory_space<vmem>>, vector<32x2xf32>,
    %cst_27 = arith.constant 0x7F800000 : f32
    %28 = vector.broadcast %cst_27 : f32 to vector<32x2xf32>
    %c8_28 = arith.constant 8 : index
    %c216 = arith.constant 216 : index
    %29 = vector.load %arg3[%c8_28, %c216] : memref<48x288xf32, #tpu.memory_space<vmem>>, vector<32x2xf32>
    tpu.vector_store %arg3[%c8_28, %c216], %28 {strides = array<i32>} : memref<48x288xf32, #tpu.memory_space<vmem>>, vector<32x2xf32>,
    %cst_29 = arith.constant 0x7F800000 : f32
    %30 = vector.broadcast %cst_29 : f32 to vector<32x2xf32>
    %c8_30 = arith.constant 8 : index
    %c250 = arith.constant 250 : index
    %31 = vector.load %arg3[%c8_30, %c250] : memref<48x288xf32, #tpu.memory_space<vmem>>, vector<32x2xf32>
    tpu.vector_store %arg3[%c8_30, %c250], %30 {strides = array<i32>} : memref<48x288xf32, #tpu.memory_space<vmem>>, vector<32x2xf32>,
    %cst_31 = arith.constant 0x7F800000 : f32
    %32 = vector.broadcast %cst_31 : f32 to vector<32x2xf32>
    %c8_32 = arith.constant 8 : index
    %c252 = arith.constant 252 : index
    %33 = vector.load %arg3[%c8_32, %c252] : memref<48x288xf32, #tpu.memory_space<vmem>>, vector<32x2xf32>
    tpu.vector_store %arg3[%c8_32, %c252], %32 {strides = array<i32>} : memref<48x288xf32, #tpu.memory_space<vmem>>, vector<32x2xf32>,
    %cst_33 = arith.constant 0x7F800000 : f32
    %34 = vector.broadcast %cst_33 : f32 to vector<32x2xf32>
    %c8_34 = arith.constant 8 : index
    %c286 = arith.constant 286 : index
    %35 = vector.load %arg3[%c8_34, %c286] : memref<48x288xf32, #tpu.memory_space<vmem>>, vector<32x2xf32>
    tpu.vector_store %arg3[%c8_34, %c286], %34 {strides = array<i32>} : memref<48x288xf32, #tpu.memory_space<vmem>>, vector<32x2xf32>,
    %c0_35 = arith.constant 0 : index
    %c0_36 = arith.constant 0 : index
    %c0_37 = arith.constant 0 : index
    %36 = vector.load %arg1[%c0_35, %c0_36, %c0_37] : memref<8x32x32xf32, #tpu.memory_space<vmem>>, vector<1x32x32xf32>
    %37 = vector.shape_cast %36 : vector<1x32x32xf32> to vector<32x32xf32>
    %c8_38 = arith.constant 8 : index
    %c2 = arith.constant 2 : index
    %38 = vector.load %arg3[%c8_38, %c2] : memref<48x288xf32, #tpu.memory_space<vmem>>, vector<32x32xf32>
    tpu.vector_store %arg3[%c8_38, %c2], %37 {strides = array<i32>} : memref<48x288xf32, #tpu.memory_space<vmem>>, vector<32x32xf32>,
    %c1 = arith.constant 1 : index
    %c0_39 = arith.constant 0 : index
    %c0_40 = arith.constant 0 : index
    %39 = vector.load %arg1[%c1, %c0_39, %c0_40] : memref<8x32x32xf32, #tpu.memory_space<vmem>>, vector<1x32x32xf32>
    %40 = vector.shape_cast %39 : vector<1x32x32xf32> to vector<32x32xf32>
    %c8_41 = arith.constant 8 : index
    %c38 = arith.constant 38 : index
    %41 = vector.load %arg3[%c8_41, %c38] : memref<48x288xf32, #tpu.memory_space<vmem>>, vector<32x32xf32>
    tpu.vector_store %arg3[%c8_41, %c38], %40 {strides = array<i32>} : memref<48x288xf32, #tpu.memory_space<vmem>>, vector<32x32xf32>,
    %c2_42 = arith.constant 2 : index
    %c0_43 = arith.constant 0 : index
    %c0_44 = arith.constant 0 : index
    %42 = vector.load %arg1[%c2_42, %c0_43, %c0_44] : memref<8x32x32xf32, #tpu.memory_space<vmem>>, vector<1x32x32xf32>
    %43 = vector.shape_cast %42 : vector<1x32x32xf32> to vector<32x32xf32>
    %c8_45 = arith.constant 8 : index
    %c74 = arith.constant 74 : index
    %44 = vector.load %arg3[%c8_45, %c74] : memref<48x288xf32, #tpu.memory_space<vmem>>, vector<32x32xf32>
    tpu.vector_store %arg3[%c8_45, %c74], %43 {strides = array<i32>} : memref<48x288xf32, #tpu.memory_space<vmem>>, vector<32x32xf32>,
    %c3 = arith.constant 3 : index
    %c0_46 = arith.constant 0 : index
    %c0_47 = arith.constant 0 : index
    %45 = vector.load %arg1[%c3, %c0_46, %c0_47] : memref<8x32x32xf32, #tpu.memory_space<vmem>>, vector<1x32x32xf32>
    %46 = vector.shape_cast %45 : vector<1x32x32xf32> to vector<32x32xf32>
    %c8_48 = arith.constant 8 : index
    %c110 = arith.constant 110 : index
    %47 = vector.load %arg3[%c8_48, %c110] : memref<48x288xf32, #tpu.memory_space<vmem>>, vector<32x32xf32>
    tpu.vector_store %arg3[%c8_48, %c110], %46 {strides = array<i32>} : memref<48x288xf32, #tpu.memory_space<vmem>>, vector<32x32xf32>,
    %c4 = arith.constant 4 : index
    %c0_49 = arith.constant 0 : index
    %c0_50 = arith.constant 0 : index
    %48 = vector.load %arg1[%c4, %c0_49, %c0_50] : memref<8x32x32xf32, #tpu.memory_space<vmem>>, vector<1x32x32xf32>
    %49 = vector.shape_cast %48 : vector<1x32x32xf32> to vector<32x32xf32>
    %c8_51 = arith.constant 8 : index
    %c146 = arith.constant 146 : index
    %50 = vector.load %arg3[%c8_51, %c146] : memref<48x288xf32, #tpu.memory_space<vmem>>, vector<32x32xf32>
    tpu.vector_store %arg3[%c8_51, %c146], %49 {strides = array<i32>} : memref<48x288xf32, #tpu.memory_space<vmem>>, vector<32x32xf32>,
    %c5 = arith.constant 5 : index
    %c0_52 = arith.constant 0 : index
    %c0_53 = arith.constant 0 : index
    %51 = vector.load %arg1[%c5, %c0_52, %c0_53] : memref<8x32x32xf32, #tpu.memory_space<vmem>>, vector<1x32x32xf32>
    %52 = vector.shape_cast %51 : vector<1x32x32xf32> to vector<32x32xf32>
    %c8_54 = arith.constant 8 : index
    %c182 = arith.constant 182 : index
    %53 = vector.load %arg3[%c8_54, %c182] : memref<48x288xf32, #tpu.memory_space<vmem>>, vector<32x32xf32>
    tpu.vector_store %arg3[%c8_54, %c182], %52 {strides = array<i32>} : memref<48x288xf32, #tpu.memory_space<vmem>>, vector<32x32xf32>,
    %c6 = arith.constant 6 : index
    %c0_55 = arith.constant 0 : index
    %c0_56 = arith.constant 0 : index
    %54 = vector.load %arg1[%c6, %c0_55, %c0_56] : memref<8x32x32xf32, #tpu.memory_space<vmem>>, vector<1x32x32xf32>
    %55 = vector.shape_cast %54 : vector<1x32x32xf32> to vector<32x32xf32>
    %c8_57 = arith.constant 8 : index
    %c218 = arith.constant 218 : index
    %56 = vector.load %arg3[%c8_57, %c218] : memref<48x288xf32, #tpu.memory_space<vmem>>, vector<32x32xf32>
    tpu.vector_store %arg3[%c8_57, %c218], %55 {strides = array<i32>} : memref<48x288xf32, #tpu.memory_space<vmem>>, vector<32x32xf32>,
    %c7 = arith.constant 7 : index
    %c0_58 = arith.constant 0 : index
    %c0_59 = arith.constant 0 : index
    %57 = vector.load %arg1[%c7, %c0_58, %c0_59] : memref<8x32x32xf32, #tpu.memory_space<vmem>>, vector<1x32x32xf32>
    %58 = vector.shape_cast %57 : vector<1x32x32xf32> to vector<32x32xf32>
    %c8_60 = arith.constant 8 : index
    %c254 = arith.constant 254 : index
    %59 = vector.load %arg3[%c8_60, %c254] : memref<48x288xf32, #tpu.memory_space<vmem>>, vector<32x32xf32>
    tpu.vector_store %arg3[%c8_60, %c254], %58 {strides = array<i32>} : memref<48x288xf32, #tpu.memory_space<vmem>>, vector<32x32xf32>,
    %c0_61 = arith.constant 0 : index
    %c0_62 = arith.constant 0 : index
    %60 = vector.load %arg3[%c0_61, %c0_62] : memref<48x288xf32, #tpu.memory_space<vmem>>, vector<48x288xf32>
    %61 = vector.extract_strided_slice %60 {offsets = [0, 0], sizes = [47, 288], strides = [1, 1]} : vector<48x288xf32> to vector<47x288xf32>
    %62 = vector.extract_strided_slice %60 {offsets = [1, 0], sizes = [47, 288], strides = [1, 1]} : vector<48x288xf32> to vector<47x288xf32>
    %63 = arith.minimumf %61, %62 : vector<47x288xf32>
    %64 = vector.extract_strided_slice %63 {offsets = [0, 0], sizes = [45, 288], strides = [1, 1]} : vector<47x288xf32> to vector<45x288xf32>
    %65 = vector.extract_strided_slice %63 {offsets = [2, 0], sizes = [45, 288], strides = [1, 1]} : vector<47x288xf32> to vector<45x288xf32>
    %66 = arith.minimumf %64, %65 : vector<45x288xf32>
    %67 = vector.extract_strided_slice %66 {offsets = [0, 0], sizes = [41, 288], strides = [1, 1]} : vector<45x288xf32> to vector<41x288xf32>
    %68 = vector.extract_strided_slice %66 {offsets = [4, 0], sizes = [41, 288], strides = [1, 1]} : vector<45x288xf32> to vector<41x288xf32>
    %69 = arith.minimumf %67, %68 : vector<41x288xf32>
    %70 = vector.extract_strided_slice %69 {offsets = [0, 0], sizes = [33, 288], strides = [1, 1]} : vector<41x288xf32> to vector<33x288xf32>
    %71 = vector.extract_strided_slice %69 {offsets = [8, 0], sizes = [33, 288], strides = [1, 1]} : vector<41x288xf32> to vector<33x288xf32>
    %72 = arith.minimumf %70, %71 : vector<33x288xf32>
    %73 = vector.extract_strided_slice %72 {offsets = [0, 0], sizes = [30, 288], strides = [1, 1]} : vector<33x288xf32> to vector<30x288xf32>
    %74 = vector.extract_strided_slice %72 {offsets = [3, 0], sizes = [30, 288], strides = [1, 1]} : vector<33x288xf32> to vector<30x288xf32>
    %75 = arith.minimumf %73, %74 : vector<30x288xf32>
    %76 = vector.extract_strided_slice %75 {offsets = [6, 0], sizes = [18, 288], strides = [1, 1]} : vector<30x288xf32> to vector<18x288xf32>
    %77 = vector.extract_strided_slice %76 {offsets = [0, 0], sizes = [18, 287], strides = [1, 1]} : vector<18x288xf32> to vector<18x287xf32>
    %78 = vector.extract_strided_slice %76 {offsets = [0, 1], sizes = [18, 287], strides = [1, 1]} : vector<18x288xf32> to vector<18x287xf32>
    %79 = arith.minimumf %77, %78 : vector<18x287xf32>
    %80 = vector.extract_strided_slice %79 {offsets = [0, 0], sizes = [18, 285], strides = [1, 1]} : vector<18x287xf32> to vector<18x285xf32>
    %81 = vector.extract_strided_slice %79 {offsets = [0, 2], sizes = [18, 285], strides = [1, 1]} : vector<18x287xf32> to vector<18x285xf32>
    %82 = arith.minimumf %80, %81 : vector<18x285xf32>
    %83 = vector.extract_strided_slice %82 {offsets = [0, 0], sizes = [18, 281], strides = [1, 1]} : vector<18x285xf32> to vector<18x281xf32>
    %84 = vector.extract_strided_slice %82 {offsets = [0, 4], sizes = [18, 281], strides = [1, 1]} : vector<18x285xf32> to vector<18x281xf32>
    %85 = arith.minimumf %83, %84 : vector<18x281xf32>
    %86 = vector.extract_strided_slice %85 {offsets = [0, 0], sizes = [18, 273], strides = [1, 1]} : vector<18x281xf32> to vector<18x273xf32>
    %87 = vector.extract_strided_slice %85 {offsets = [0, 8], sizes = [18, 273], strides = [1, 1]} : vector<18x281xf32> to vector<18x273xf32>
    %88 = arith.minimumf %86, %87 : vector<18x273xf32>
    %89 = vector.extract_strided_slice %88 {offsets = [0, 0], sizes = [18, 270], strides = [1, 1]} : vector<18x273xf32> to vector<18x270xf32>
    %90 = vector.extract_strided_slice %88 {offsets = [0, 3], sizes = [18, 270], strides = [1, 1]} : vector<18x273xf32> to vector<18x270xf32>
    %91 = arith.minimumf %89, %90 : vector<18x270xf32>
    %c0_63 = arith.constant 0 : index
    %c0_64 = arith.constant 0 : index
    %c0_65 = arith.constant 0 : index
    %92 = vector.load %arg2[%c0_63, %c0_64, %c0_65] : memref<1x18x270xf32, #tpu.memory_space<vmem>>, vector<1x18x270xf32>
    %93 = vector.shape_cast %92 : vector<1x18x270xf32> to vector<18x270xf32>
    %94 = vector.shape_cast %91 : vector<18x270xf32> to vector<1x18x270xf32>
    tpu.vector_store %arg2[%c0_63, %c0_64, %c0_65], %94 {strides = array<i32>} : memref<1x18x270xf32, #tpu.memory_space<vmem>>, vector<1x18x270xf32>,
    return
  }
  func.func @transform_0(%arg0: i32) -> (i32, i32, i32) {
    %c0_i32 = arith.constant 0 : i32
    %c0_i32_0 = arith.constant 0 : i32
    %c0_i32_1 = arith.constant 0 : i32
    return %arg0, %c0_i32, %c0_i32_0 : i32, i32, i32
  }
  func.func @transform_1(%arg0: i32) -> (i32, i32, i32) {
    %c0_i32 = arith.constant 0 : i32
    %c0_i32_0 = arith.constant 0 : i32
    %c0_i32_1 = arith.constant 0 : i32
    return %arg0, %c0_i32, %c0_i32_0 : i32, i32, i32
  }
}

</mosaic_0001>

<llo_original>
// kernel: erosion.1
$region0: #{erosion.1}
  #allocation0 [shape = 'u32[]', space=smem, size = 0x4, offset = 0x4, fixed_abs, tag = 'smem constant byte address 0x4 - core index']
  #allocation1 [shape = 'u32[144,128]{1,0:T(1,128)}', space=vmem, size = 0x12000, scoped, tag = 'internal scratch']
  #allocation2 [shape = 'f32[48,288]{1,0:T(8,128)}', space=vmem, size = 0x12000, scoped, tag = 'scratch operand']
  %s0 = inlined_call_operand.hbm [shape: f32[8,32,32], index: 0, kind: input, shape index: {}]
  %s1 = inlined_call_operand.vmem [shape: f32[1,18,270], index: 1, kind: output, shape index: {}]
  %s2 = sld [smem:[#allocation0]]
  $region18: #{erosion.1} parent=0
    _
  %s4 = ssub.s32 1, %s2
  %s5 = scalar_select 0, %s4, %s2
  $region1: #{erosion.1} parent=0
    #allocation3 [shape = 'u8[131072]{0}', space=vmem, size = 0x20000, scoped, tag = 'input window, operand 0, single buffered']
    #allocation4 [shape = 's32[1]{0}', space=sflag, size = 0x4, scoped, tag = 'scoped memory for erosion.1']
    %6 = vsyncpa [#allocation4], 0
    // Predicated region
    $region2: #{erosion.1} parent=1 // pred_check
      _
    $region3: #{erosion.1} parent=1 // pred_check_branch
      %8 = sbr.rel (0) target = $region5
    $region4: #{erosion.1} parent=1 // pred_region
      %s10 = ssub.s32 4096, 4096
      %11 = vsyncadd [#allocation4], %s10
      %s12 = sshll.u32 [#allocation3], 4
      %s13 = int_to_ptr.vmem [resolvable:$true] %s12
      %18 = dma.hbm_to_vmem [thread:$0]  %s0, 4096, %s13, [#allocation4], 128, 128, 8
    $region5: #{erosion.1} parent=1 // pred_fallthru
      _
    // Predicated region
    $region6: #{erosion.1} parent=1 // pred_check
      _
    $region7: #{erosion.1} parent=1 // pred_check_branch
      %20 = sbr.rel (0) target = $region9
    $region8: #{erosion.1} parent=1 // pred_region
      %21 = dma.done [#allocation4], 4096
    $region9: #{erosion.1} parent=1 // pred_fallthru
      _
    %22 = vst [vmem:[#allocation2] sm:$0xff] inf
    %23 = vst [vmem:[#allocation2 + $0x8] sm:$0xff] inf
    %vm24 = vcmask 261120
    %25 = vst.msk [vmem:[#allocation2 + $0x10] sm:$0xff] %vm24, inf
    %26 = vst [vmem:[#allocation2 + $0x78] sm:$0xff] inf
    %27 = vst [vmem:[#allocation2 + $0x80] sm:$0xff] inf
    %28 = vst.msk [vmem:[#allocation2 + $0x88] sm:$0xff] %vm24, inf
    %vm29 = vcmask 15360
    %30 = vst.msk [vmem:[#allocation2 + $0x18] sm:$0xff] %vm29, inf
    %31 = vst.msk [vmem:[#allocation2 + $0x30] sm:$0xff] %vm29, inf
    %32 = vst.msk [vmem:[#allocation2 + $0x48] sm:$0xff] %vm29, inf
    %33 = vst.msk [vmem:[#allocation2 + $0x60] sm:$0xff] %vm29, inf
    %vm34 = vcmask 294160
    %35 = vst.msk [vmem:[#allocation2 + $0x18] sm:$0xff] %vm34, inf
    %36 = vst.msk [vmem:[#allocation2 + $0x30] sm:$0xff] %vm34, inf
    %37 = vst.msk [vmem:[#allocation2 + $0x48] sm:$0xff] %vm34, inf
    %38 = vst.msk [vmem:[#allocation2 + $0x60] sm:$0xff] %vm34, inf
    %vm39 = vcmask 310560
    %40 = vst.msk [vmem:[#allocation2 + $0x18] sm:$0xff] %vm39, inf
    %41 = vst.msk [vmem:[#allocation2 + $0x30] sm:$0xff] %vm39, inf
    %42 = vst.msk [vmem:[#allocation2 + $0x48] sm:$0xff] %vm39, inf
    %43 = vst.msk [vmem:[#allocation2 + $0x60] sm:$0xff] %vm39, inf
    %vm44 = vcmask 589360
    %45 = vst.msk [vmem:[#allocation2 + $0x18] sm:$0xff] %vm44, inf
    %46 = vst.msk [vmem:[#allocation2 + $0x30] sm:$0xff] %vm44, inf
    %47 = vst.msk [vmem:[#allocation2 + $0x48] sm:$0xff] %vm44, inf
    %48 = vst.msk [vmem:[#allocation2 + $0x60] sm:$0xff] %vm44, inf
    %vm49 = vcmask 605760
    %50 = vst.msk [vmem:[#allocation2 + $0x18] sm:$0xff] %vm49, inf
    %51 = vst.msk [vmem:[#allocation2 + $0x30] sm:$0xff] %vm49, inf
    %52 = vst.msk [vmem:[#allocation2 + $0x48] sm:$0xff] %vm49, inf
    %53 = vst.msk [vmem:[#allocation2 + $0x60] sm:$0xff] %vm49, inf
    %vm54 = vcmask 884560
    %55 = vst.msk [vmem:[#allocation2 + $0x18] sm:$0xff] %vm54, inf
    %56 = vst.msk [vmem:[#allocation2 + $0x30] sm:$0xff] %vm54, inf
    %57 = vst.msk [vmem:[#allocation2 + $0x48] sm:$0xff] %vm54, inf
    %58 = vst.msk [vmem:[#allocation2 + $0x60] sm:$0xff] %vm54, inf
    %vm59 = vcmask 900960
    %60 = vst.msk [vmem:[#allocation2 + $0x18] sm:$0xff] %vm59, inf
    %61 = vst.msk [vmem:[#allocation2 + $0x30] sm:$0xff] %vm59, inf
    %62 = vst.msk [vmem:[#allocation2 + $0x48] sm:$0xff] %vm59, inf
    %63 = vst.msk [vmem:[#allocation2 + $0x60] sm:$0xff] %vm59, inf
    %vm64 = vcmask 130160
    %65 = vst.msk [vmem:[#allocation2 + $0x20] sm:$0xff] %vm64, inf
    %66 = vst.msk [vmem:[#allocation2 + $0x38] sm:$0xff] %vm64, inf
    %67 = vst.msk [vmem:[#allocation2 + $0x50] sm:$0xff] %vm64, inf
    %68 = vst.msk [vmem:[#allocation2 + $0x68] sm:$0xff] %vm64, inf
    %vm69 = vcmask 146560
    %70 = vst.msk [vmem:[#allocation2 + $0x20] sm:$0xff] %vm69, inf
    %71 = vst.msk [vmem:[#allocation2 + $0x38] sm:$0xff] %vm69, inf
    %72 = vst.msk [vmem:[#allocation2 + $0x50] sm:$0xff] %vm69, inf
    %73 = vst.msk [vmem:[#allocation2 + $0x68] sm:$0xff] %vm69, inf
    %vm74 = vcmask 425360
    %75 = vst.msk [vmem:[#allocation2 + $0x20] sm:$0xff] %vm74, inf
    %76 = vst.msk [vmem:[#allocation2 + $0x38] sm:$0xff] %vm74, inf
    %77 = vst.msk [vmem:[#allocation2 + $0x50] sm:$0xff] %vm74, inf
    %78 = vst.msk [vmem:[#allocation2 + $0x68] sm:$0xff] %vm74, inf
    %vm79 = vcmask 441760
    %80 = vst.msk [vmem:[#allocation2 + $0x20] sm:$0xff] %vm79, inf
    %81 = vst.msk [vmem:[#allocation2 + $0x38] sm:$0xff] %vm79, inf
    %82 = vst.msk [vmem:[#allocation2 + $0x50] sm:$0xff] %vm79, inf
    %83 = vst.msk [vmem:[#allocation2 + $0x68] sm:$0xff] %vm79, inf
    %vm84 = vcmask 720560
    %85 = vst.msk [vmem:[#allocation2 + $0x20] sm:$0xff] %vm84, inf
    %86 = vst.msk [vmem:[#allocation2 + $0x38] sm:$0xff] %vm84, inf
    %87 = vst.msk [vmem:[#allocation2 + $0x50] sm:$0xff] %vm84, inf
    %88 = vst.msk [vmem:[#allocation2 + $0x68] sm:$0xff] %vm84, inf
    %vm89 = vcmask 736960
    %90 = vst.msk [vmem:[#allocation2 + $0x20] sm:$0xff] %vm89, inf
    %91 = vst.msk [vmem:[#allocation2 + $0x38] sm:$0xff] %vm89, inf
    %92 = vst.msk [vmem:[#allocation2 + $0x50] sm:$0xff] %vm89, inf
    %93 = vst.msk [vmem:[#allocation2 + $0x68] sm:$0xff] %vm89, inf
    %vm94 = vcmask 1015760
    %95 = vst.msk [vmem:[#allocation2 + $0x20] sm:$0xff] %vm94, inf
    %96 = vst.msk [vmem:[#allocation2 + $0x38] sm:$0xff] %vm94, inf
    %97 = vst.msk [vmem:[#allocation2 + $0x50] sm:$0xff] %vm94, inf
    %98 = vst.msk [vmem:[#allocation2 + $0x68] sm:$0xff] %vm94, inf
    %vm99 = vcmask 1032160
    %100 = vst.msk [vmem:[#allocation2 + $0x20] sm:$0xff] %vm99, inf
    %101 = vst.msk [vmem:[#allocation2 + $0x38] sm:$0xff] %vm99, inf
    %102 = vst.msk [vmem:[#allocation2 + $0x50] sm:$0xff] %vm99, inf
    %103 = vst.msk [vmem:[#allocation2 + $0x68] sm:$0xff] %vm99, inf
    %vm104 = vcmask 261360
    %105 = vst.msk [vmem:[#allocation2 + $0x28] sm:$0xff] %vm104, inf
    %106 = vst.msk [vmem:[#allocation2 + $0x40] sm:$0xff] %vm104, inf
    %107 = vst.msk [vmem:[#allocation2 + $0x58] sm:$0xff] %vm104, inf
    %108 = vst.msk [vmem:[#allocation2 + $0x70] sm:$0xff] %vm104, inf
    %v109 = vld [vmem:[#allocation3] sm:$0xff]
    %v110 = vld [vmem:[#allocation3 + $0x8] sm:$0xff]
    %v111 = vld [vmem:[#allocation3 + $0x10] sm:$0xff]
    %v112 = vld [vmem:[#allocation3 + $0x18] sm:$0xff]
    %117 = vrot.lane.b32.xlu0 %v109, 2
    %v118 = vpop.permute.xlu0 %117
    %119 = vrot.lane.b32.xlu0 %v110, 2
    %v120 = vpop.permute.xlu0 %119
    %121 = vrot.lane.b32.xlu0 %v111, 2
    %v122 = vpop.permute.xlu0 %121
    %123 = vrot.lane.b32.xlu0 %v112, 2
    %v124 = vpop.permute.xlu0 %123
    %vm129 = vcmask 277520
    %130 = vst.msk [vmem:[#allocation2 + $0x18] sm:$0xff] %vm129, %v118
    %131 = vst.msk [vmem:[#allocation2 + $0x30] sm:$0xff] %vm129, %v120
    %132 = vst.msk [vmem:[#allocation2 + $0x48] sm:$0xff] %vm129, %v122
    %133 = vst.msk [vmem:[#allocation2 + $0x60] sm:$0xff] %vm129, %v124
    %s134 = scalar_lea.vmem [#allocation3], 32
    %v135 = vld [vmem:[%s134] sm:$0xff]
    %v136 = vld [vmem:[%s134 + $0x8] sm:$0xff]
    %v137 = vld [vmem:[%s134 + $0x10] sm:$0xff]
    %v138 = vld [vmem:[%s134 + $0x18] sm:$0xff]
    %143 = vrot.lane.b32.xlu0 %v135, 38
    %v144 = vpop.permute.xlu0 %143
    %145 = vrot.lane.b32.xlu0 %v136, 38
    %v146 = vpop.permute.xlu0 %145
    %147 = vrot.lane.b32.xlu0 %v137, 38
    %v148 = vpop.permute.xlu0 %147
    %149 = vrot.lane.b32.xlu0 %v138, 38
    %v150 = vpop.permute.xlu0 %149
    %vm155 = vcmask 572720
    %156 = vst.msk [vmem:[#allocation2 + $0x18] sm:$0xff] %vm155, %v144
    %157 = vst.msk [vmem:[#allocation2 + $0x30] sm:$0xff] %vm155, %v146
    %158 = vst.msk [vmem:[#allocation2 + $0x48] sm:$0xff] %vm155, %v148
    %159 = vst.msk [vmem:[#allocation2 + $0x60] sm:$0xff] %vm155, %v150
    %s160 = scalar_lea.vmem [#allocation3], 64
    %v161 = vld [vmem:[%s160] sm:$0xff]
    %v162 = vld [vmem:[%s160 + $0x8] sm:$0xff]
    %v163 = vld [vmem:[%s160 + $0x10] sm:$0xff]
    %v164 = vld [vmem:[%s160 + $0x18] sm:$0xff]
    %169 = vrot.lane.b32.xlu0 %v161, 74
    %v170 = vpop.permute.xlu0 %169
    %171 = vrot.lane.b32.xlu0 %v162, 74
    %v172 = vpop.permute.xlu0 %171
    %173 = vrot.lane.b32.xlu0 %v163, 74
    %v174 = vpop.permute.xlu0 %173
    %175 = vrot.lane.b32.xlu0 %v164, 74
    %v176 = vpop.permute.xlu0 %175
    %vm181 = vcmask 867920
    %182 = vst.msk [vmem:[#allocation2 + $0x18] sm:$0xff] %vm181, %v170
    %183 = vst.msk [vmem:[#allocation2 + $0x30] sm:$0xff] %vm181, %v172
    %184 = vst.msk [vmem:[#allocation2 + $0x48] sm:$0xff] %vm181, %v174
    %185 = vst.msk [vmem:[#allocation2 + $0x60] sm:$0xff] %vm181, %v176
    %s186 = scalar_lea.vmem [#allocation3], 96
    %v187 = vld [vmem:[%s186] sm:$0xff]
    %v188 = vld [vmem:[%s186 + $0x8] sm:$0xff]
    %v189 = vld [vmem:[%s186 + $0x10] sm:$0xff]
    %v190 = vld [vmem:[%s186 + $0x18] sm:$0xff]
    %195 = vrot.lane.b32.xlu0 %v187, 110
    %v196 = vpop.permute.xlu0 %195
    %197 = vrot.lane.b32.xlu0 %v188, 110
    %v198 = vpop.permute.xlu0 %197
    %199 = vrot.lane.b32.xlu0 %v189, 110
    %v200 = vpop.permute.xlu0 %199
    %201 = vrot.lane.b32.xlu0 %v190, 110
    %v202 = vpop.permute.xlu0 %201
    %vm207 = vcmask 1048432
    %208 = vst.msk [vmem:[#allocation2 + $0x18] sm:$0xff] %vm207, %v196
    %vm209 = vcmask 113664
    %210 = vst.msk [vmem:[#allocation2 + $0x20] sm:$0xff] %vm209, %v196
    %211 = vst.msk [vmem:[#allocation2 + $0x30] sm:$0xff] %vm207, %v198
    %212 = vst.msk [vmem:[#allocation2 + $0x38] sm:$0xff] %vm209, %v198
    %213 = vst.msk [vmem:[#allocation2 + $0x48] sm:$0xff] %vm207, %v200
    %214 = vst.msk [vmem:[#allocation2 + $0x50] sm:$0xff] %vm209, %v200
    %215 = vst.msk [vmem:[#allocation2 + $0x60] sm:$0xff] %vm207, %v202
    %216 = vst.msk [vmem:[#allocation2 + $0x68] sm:$0xff] %vm209, %v202
    %s217 = scalar_lea.vmem [#allocation3], 128
    %v218 = vld [vmem:[%s217] sm:$0xff]
    %v219 = vld [vmem:[%s217 + $0x8] sm:$0xff]
    %v220 = vld [vmem:[%s217 + $0x10] sm:$0xff]
    %v221 = vld [vmem:[%s217 + $0x18] sm:$0xff]
    %226 = vrot.lane.b32.xlu0 %v218, 18
    %v227 = vpop.permute.xlu0 %226
    %228 = vrot.lane.b32.xlu0 %v219, 18
    %v229 = vpop.permute.xlu0 %228
    %230 = vrot.lane.b32.xlu0 %v220, 18
    %v231 = vpop.permute.xlu0 %230
    %232 = vrot.lane.b32.xlu0 %v221, 18
    %v233 = vpop.permute.xlu0 %232
    %vm238 = vcmask 408720
    %239 = vst.msk [vmem:[#allocation2 + $0x20] sm:$0xff] %vm238, %v227
    %240 = vst.msk [vmem:[#allocation2 + $0x38] sm:$0xff] %vm238, %v229
    %241 = vst.msk [vmem:[#allocation2 + $0x50] sm:$0xff] %vm238, %v231
    %242 = vst.msk [vmem:[#allocation2 + $0x68] sm:$0xff] %vm238, %v233
    %s243 = scalar_lea.vmem [#allocation3], 160
    %v244 = vld [vmem:[%s243] sm:$0xff]
    %v245 = vld [vmem:[%s243 + $0x8] sm:$0xff]
    %v246 = vld [vmem:[%s243 + $0x10] sm:$0xff]
    %v247 = vld [vmem:[%s243 + $0x18] sm:$0xff]
    %252 = vrot.lane.b32.xlu0 %v244, 54
    %v253 = vpop.permute.xlu0 %252
    %254 = vrot.lane.b32.xlu0 %v245, 54
    %v255 = vpop.permute.xlu0 %254
    %256 = vrot.lane.b32.xlu0 %v246, 54
    %v257 = vpop.permute.xlu0 %256
    %258 = vrot.lane.b32.xlu0 %v247, 54
    %v259 = vpop.permute.xlu0 %258
    %vm264 = vcmask 703920
    %265 = vst.msk [vmem:[#allocation2 + $0x20] sm:$0xff] %vm264, %v253
    %266 = vst.msk [vmem:[#allocation2 + $0x38] sm:$0xff] %vm264, %v255
    %267 = vst.msk [vmem:[#allocation2 + $0x50] sm:$0xff] %vm264, %v257
    %268 = vst.msk [vmem:[#allocation2 + $0x68] sm:$0xff] %vm264, %v259
    %s269 = scalar_lea.vmem [#allocation3], 192
    %v270 = vld [vmem:[%s269] sm:$0xff]
    %v271 = vld [vmem:[%s269 + $0x8] sm:$0xff]
    %v272 = vld [vmem:[%s269 + $0x10] sm:$0xff]
    %v273 = vld [vmem:[%s269 + $0x18] sm:$0xff]
    %278 = vrot.lane.b32.xlu0 %v270, 90
    %v279 = vpop.permute.xlu0 %278
    %280 = vrot.lane.b32.xlu0 %v271, 90
    %v281 = vpop.permute.xlu0 %280
    %282 = vrot.lane.b32.xlu0 %v272, 90
    %v283 = vpop.permute.xlu0 %282
    %284 = vrot.lane.b32.xlu0 %v273, 90
    %v285 = vpop.permute.xlu0 %284
    %vm290 = vcmask 999120
    %291 = vst.msk [vmem:[#allocation2 + $0x20] sm:$0xff] %vm290, %v279
    %292 = vst.msk [vmem:[#allocation2 + $0x38] sm:$0xff] %vm290, %v281
    %293 = vst.msk [vmem:[#allocation2 + $0x50] sm:$0xff] %vm290, %v283
    %294 = vst.msk [vmem:[#allocation2 + $0x68] sm:$0xff] %vm290, %v285
    %s295 = scalar_lea.vmem [#allocation3], 224
    %v296 = vld [vmem:[%s295] sm:$0xff]
    %v297 = vld [vmem:[%s295 + $0x8] sm:$0xff]
    %v298 = vld [vmem:[%s295 + $0x10] sm:$0xff]
    %v299 = vld [vmem:[%s295 + $0x18] sm:$0xff]
    %304 = vrot.lane.b32.xlu0 %v296, 126
    %v305 = vpop.permute.xlu0 %304
    %306 = vrot.lane.b32.xlu0 %v297, 126
    %v307 = vpop.permute.xlu0 %306
    %308 = vrot.lane.b32.xlu0 %v298, 126
    %v309 = vpop.permute.xlu0 %308
    %310 = vrot.lane.b32.xlu0 %v299, 126
    %v311 = vpop.permute.xlu0 %310
    %vm316 = vcmask 1048560
    %317 = vst.msk [vmem:[#allocation2 + $0x20] sm:$0xff] %vm316, %v305
    %vm318 = vcmask 244736
    %319 = vst.msk [vmem:[#allocation2 + $0x28] sm:$0xff] %vm318, %v305
    %320 = vst.msk [vmem:[#allocation2 + $0x38] sm:$0xff] %vm316, %v307
    %321 = vst.msk [vmem:[#allocation2 + $0x40] sm:$0xff] %vm318, %v307
    %322 = vst.msk [vmem:[#allocation2 + $0x50] sm:$0xff] %vm316, %v309
    %323 = vst.msk [vmem:[#allocation2 + $0x58] sm:$0xff] %vm318, %v309
    %324 = vst.msk [vmem:[#allocation2 + $0x68] sm:$0xff] %vm316, %v311
    %325 = vst.msk [vmem:[#allocation2 + $0x70] sm:$0xff] %vm318, %v311
    %v326 = vld [vmem:[#allocation2] sm:$0xff]
    %v327 = vld [vmem:[#allocation2 + $0x8] sm:$0xff]
    %v328 = vld [vmem:[#allocation2 + $0x10] sm:$0xff]
    %v329 = vld [vmem:[#allocation2 + $0x18] sm:$0xff]
    %v330 = vld [vmem:[#allocation2 + $0x20] sm:$0xff]
    %v331 = vld [vmem:[#allocation2 + $0x28] sm:$0xff]
    %v332 = vld [vmem:[#allocation2 + $0x30] sm:$0xff]
    %v333 = vld [vmem:[#allocation2 + $0x38] sm:$0xff]
    %v334 = vld [vmem:[#allocation2 + $0x40] sm:$0xff]
    %v335 = vld [vmem:[#allocation2 + $0x48] sm:$0xff]
    %v336 = vld [vmem:[#allocation2 + $0x50] sm:$0xff]
    %v337 = vld [vmem:[#allocation2 + $0x58] sm:$0xff]
    %v338 = vld [vmem:[#allocation2 + $0x60] sm:$0xff]
    %v339 = vld [vmem:[#allocation2 + $0x68] sm:$0xff]
    %v340 = vld [vmem:[#allocation2 + $0x70] sm:$0xff]
    %v341 = vld [vmem:[#allocation2 + $0x78] sm:$0xff]
    %v342 = vld [vmem:[#allocation2 + $0x80] sm:$0xff]
    %v343 = vld [vmem:[#allocation2 + $0x88] sm:$0xff]
    %vm362 = vcmask 1046528
    %v363 = vrot.slane %v326, 1
    %v364 = vrot.slane %v329, 1
    %v365 = vsel %vm362, %v363, %v364
    %v366 = vrot.slane %v327, 1
    %v367 = vrot.slane %v330, 1
    %v368 = vsel %vm362, %v366, %v367
    %v369 = vrot.slane %v328, 1
    %v370 = vrot.slane %v331, 1
    %v371 = vsel %vm362, %v369, %v370
    %v372 = vrot.slane %v332, 1
    %v373 = vsel %vm362, %v364, %v372
    %v374 = vrot.slane %v333, 1
    %v375 = vsel %vm362, %v367, %v374
    %v376 = vrot.slane %v334, 1
    %v377 = vsel %vm362, %v370, %v376
    %v378 = vrot.slane %v335, 1
    %v379 = vsel %vm362, %v372, %v378
    %v380 = vrot.slane %v336, 1
    %v381 = vsel %vm362, %v374, %v380
    %v382 = vrot.slane %v337, 1
    %v383 = vsel %vm362, %v376, %v382
    %v384 = vrot.slane %v338, 1
    %v385 = vsel %vm362, %v378, %v384
    %v386 = vrot.slane %v339, 1
    %v387 = vsel %vm362, %v380, %v386
    %v388 = vrot.slane %v340, 1
    %v389 = vsel %vm362, %v382, %v388
    %v390 = vrot.slane %v341, 1
    %v391 = vsel %vm362, %v384, %v390
    %v392 = vrot.slane %v342, 1
    %v393 = vsel %vm362, %v386, %v392
    %v394 = vrot.slane %v343, 1
    %v395 = vsel %vm362, %v388, %v394
    %v414 = vmin.f32 %v326, %v365
    %v415 = vmin.f32 %v327, %v368
    %v416 = vmin.f32 %v328, %v371
    %v417 = vmin.f32 %v329, %v373
    %v418 = vmin.f32 %v330, %v375
    %v419 = vmin.f32 %v331, %v377
    %v420 = vmin.f32 %v332, %v379
    %v421 = vmin.f32 %v333, %v381
    %v422 = vmin.f32 %v334, %v383
    %v423 = vmin.f32 %v335, %v385
    %v424 = vmin.f32 %v336, %v387
    %v425 = vmin.f32 %v337, %v389
    %v426 = vmin.f32 %v338, %v391
    %v427 = vmin.f32 %v339, %v393
    %v428 = vmin.f32 %v340, %v395
    %v429 = vmin.f32 %v341, %v390
    %v430 = vmin.f32 %v342, %v392
    %v431 = vmin.f32 %v343, %v394
    %vm450 = vcmask 1045504
    %v451 = vrot.slane %v414, 2
    %v452 = vrot.slane %v417, 2
    %v453 = vsel %vm450, %v451, %v452
    %v454 = vrot.slane %v415, 2
    %v455 = vrot.slane %v418, 2
    %v456 = vsel %vm450, %v454, %v455
    %v457 = vrot.slane %v416, 2
    %v458 = vrot.slane %v419, 2
    %v459 = vsel %vm450, %v457, %v458
    %v460 = vrot.slane %v420, 2
    %v461 = vsel %vm450, %v452, %v460
    %v462 = vrot.slane %v421, 2
    %v463 = vsel %vm450, %v455, %v462
    %v464 = vrot.slane %v422, 2
    %v465 = vsel %vm450, %v458, %v464
    %v466 = vrot.slane %v423, 2
    %v467 = vsel %vm450, %v460, %v466
    %v468 = vrot.slane %v424, 2
    %v469 = vsel %vm450, %v462, %v468
    %v470 = vrot.slane %v425, 2
    %v471 = vsel %vm450, %v464, %v470
    %v472 = vrot.slane %v426, 2
    %v473 = vsel %vm450, %v466, %v472
    %v474 = vrot.slane %v427, 2
    %v475 = vsel %vm450, %v468, %v474
    %v476 = vrot.slane %v428, 2
    %v477 = vsel %vm450, %v470, %v476
    %v478 = vrot.slane %v429, 2
    %v479 = vsel %vm450, %v472, %v478
    %v480 = vrot.slane %v430, 2
    %v481 = vsel %vm450, %v474, %v480
    %v482 = vrot.slane %v431, 2
    %v483 = vsel %vm450, %v476, %v482
    %v502 = vmin.f32 %v414, %v453
    %v503 = vmin.f32 %v415, %v456
    %v504 = vmin.f32 %v416, %v459
    %v505 = vmin.f32 %v417, %v461
    %v506 = vmin.f32 %v418, %v463
    %v507 = vmin.f32 %v419, %v465
    %v508 = vmin.f32 %v420, %v467
    %v509 = vmin.f32 %v421, %v469
    %v510 = vmin.f32 %v422, %v471
    %v511 = vmin.f32 %v423, %v473
    %v512 = vmin.f32 %v424, %v475
    %v513 = vmin.f32 %v425, %v477
    %v514 = vmin.f32 %v426, %v479
    %v515 = vmin.f32 %v427, %v481
    %v516 = vmin.f32 %v428, %v483
    %v517 = vmin.f32 %v429, %v478
    %v518 = vmin.f32 %v430, %v480
    %v519 = vmin.f32 %v431, %v482
    %vm538 = vcmask 1043456
    %v539 = vrot.slane %v502, 4
    %v540 = vrot.slane %v505, 4
    %v541 = vsel %vm538, %v539, %v540
    %v542 = vrot.slane %v503, 4
    %v543 = vrot.slane %v506, 4
    %v544 = vsel %vm538, %v542, %v543
    %v545 = vrot.slane %v504, 4
    %v546 = vrot.slane %v507, 4
    %v547 = vsel %vm538, %v545, %v546
    %v548 = vrot.slane %v508, 4
    %v549 = vsel %vm538, %v540, %v548
    %v550 = vrot.slane %v509, 4
    %v551 = vsel %vm538, %v543, %v550
    %v552 = vrot.slane %v510, 4
    %v553 = vsel %vm538, %v546, %v552
    %v554 = vrot.slane %v511, 4
    %v555 = vsel %vm538, %v548, %v554
    %v556 = vrot.slane %v512, 4
    %v557 = vsel %vm538, %v550, %v556
    %v558 = vrot.slane %v513, 4
    %v559 = vsel %vm538, %v552, %v558
    %v560 = vrot.slane %v514, 4
    %v561 = vsel %vm538, %v554, %v560
    %v562 = vrot.slane %v515, 4
    %v563 = vsel %vm538, %v556, %v562
    %v564 = vrot.slane %v516, 4
    %v565 = vsel %vm538, %v558, %v564
    %v566 = vrot.slane %v517, 4
    %v567 = vsel %vm538, %v560, %v566
    %v568 = vrot.slane %v518, 4
    %v569 = vsel %vm538, %v562, %v568
    %v570 = vrot.slane %v519, 4
    %v571 = vsel %vm538, %v564, %v570
    %v587 = vmin.f32 %v502, %v541
    %v588 = vmin.f32 %v503, %v544
    %v589 = vmin.f32 %v504, %v547
    %v590 = vmin.f32 %v505, %v549
    %v591 = vmin.f32 %v506, %v551
    %v592 = vmin.f32 %v507, %v553
    %v593 = vmin.f32 %v508, %v555
    %v594 = vmin.f32 %v509, %v557
    %v595 = vmin.f32 %v510, %v559
    %v596 = vmin.f32 %v511, %v561
    %v597 = vmin.f32 %v512, %v563
    %v598 = vmin.f32 %v513, %v565
    %v599 = vmin.f32 %v514, %v567
    %v600 = vmin.f32 %v515, %v569
    %v601 = vmin.f32 %v516, %v571
    %v602 = vmin.f32 %v587, %v590
    %v603 = vmin.f32 %v588, %v591
    %v604 = vmin.f32 %v589, %v592
    %v605 = vmin.f32 %v590, %v593
    %v606 = vmin.f32 %v591, %v594
    %v607 = vmin.f32 %v592, %v595
    %v608 = vmin.f32 %v593, %v596
    %v609 = vmin.f32 %v594, %v597
    %v610 = vmin.f32 %v595, %v598
    %v611 = vmin.f32 %v596, %v599
    %v612 = vmin.f32 %v597, %v600
    %v613 = vmin.f32 %v598, %v601
    %vm626 = vcmask 1044480
    %v627 = vrot.slane %v602, 3
    %v628 = vrot.slane %v605, 3
    %v629 = vsel %vm626, %v627, %v628
    %v630 = vrot.slane %v603, 3
    %v631 = vrot.slane %v606, 3
    %v632 = vsel %vm626, %v630, %v631
    %v633 = vrot.slane %v604, 3
    %v634 = vrot.slane %v607, 3
    %v635 = vsel %vm626, %v633, %v634
    %v636 = vrot.slane %v608, 3
    %v637 = vsel %vm626, %v628, %v636
    %v638 = vrot.slane %v609, 3
    %v639 = vsel %vm626, %v631, %v638
    %v640 = vrot.slane %v610, 3
    %v641 = vsel %vm626, %v634, %v640
    %v642 = vrot.slane %v611, 3
    %v643 = vsel %vm626, %v636, %v642
    %v644 = vrot.slane %v612, 3
    %v645 = vsel %vm626, %v638, %v644
    %v646 = vrot.slane %v613, 3
    %v647 = vsel %vm626, %v640, %v646
    %v657 = vmin.f32 %v602, %v629
    %v658 = vmin.f32 %v603, %v632
    %v659 = vmin.f32 %v604, %v635
    %v660 = vmin.f32 %v605, %v637
    %v661 = vmin.f32 %v606, %v639
    %v662 = vmin.f32 %v607, %v641
    %v663 = vmin.f32 %v608, %v643
    %v664 = vmin.f32 %v609, %v645
    %v665 = vmin.f32 %v610, %v647
    %675 = vrot.lane.b32.xlu0 %v657, 127
    %v676 = vpop.permute.xlu0 %675
    %677 = vrot.lane.b32.xlu0 %v658, 127
    %v678 = vpop.permute.xlu0 %677
    %679 = vrot.lane.b32.xlu0 %v659, 127
    %v680 = vpop.permute.xlu0 %679
    %681 = vrot.lane.b32.xlu0 %v660, 127
    %v682 = vpop.permute.xlu0 %681
    %683 = vrot.lane.b32.xlu0 %v661, 127
    %v684 = vpop.permute.xlu0 %683
    %685 = vrot.lane.b32.xlu0 %v662, 127
    %v686 = vpop.permute.xlu0 %685
    %687 = vrot.lane.b32.xlu0 %v663, 127
    %v688 = vpop.permute.xlu0 %687
    %689 = vrot.lane.b32.xlu0 %v664, 127
    %v690 = vpop.permute.xlu0 %689
    %691 = vrot.lane.b32.xlu0 %v665, 127
    %v692 = vpop.permute.xlu0 %691
    %vm693 = vcmask 1039360
    %v694 = vsel %vm693, %v676, %v678
    %v695 = vsel %vm693, %v678, %v680
    %v696 = vsel %vm693, %v682, %v684
    %v697 = vsel %vm693, %v684, %v686
    %v698 = vsel %vm693, %v688, %v690
    %v699 = vsel %vm693, %v690, %v692
    %v709 = vmin.f32 %v657, %v694
    %v710 = vmin.f32 %v658, %v695
    %v711 = vmin.f32 %v659, %v680
    %v712 = vmin.f32 %v660, %v696
    %v713 = vmin.f32 %v661, %v697
    %v714 = vmin.f32 %v662, %v686
    %v715 = vmin.f32 %v663, %v698
    %v716 = vmin.f32 %v664, %v699
    %v717 = vmin.f32 %v665, %v692
    %727 = vrot.lane.b32.xlu0 %v709, 126
    %v728 = vpop.permute.xlu0 %727
    %729 = vrot.lane.b32.xlu0 %v710, 126
    %v730 = vpop.permute.xlu0 %729
    %731 = vrot.lane.b32.xlu0 %v711, 126
    %v732 = vpop.permute.xlu0 %731
    %733 = vrot.lane.b32.xlu0 %v712, 126
    %v734 = vpop.permute.xlu0 %733
    %735 = vrot.lane.b32.xlu0 %v713, 126
    %v736 = vpop.permute.xlu0 %735
    %737 = vrot.lane.b32.xlu0 %v714, 126
    %v738 = vpop.permute.xlu0 %737
    %739 = vrot.lane.b32.xlu0 %v715, 126
    %v740 = vpop.permute.xlu0 %739
    %741 = vrot.lane.b32.xlu0 %v716, 126
    %v742 = vpop.permute.xlu0 %741
    %743 = vrot.lane.b32.xlu0 %v717, 126
    %v744 = vpop.permute.xlu0 %743
    %vm745 = vcmask 1031168
    %v746 = vsel %vm745, %v728, %v730
    %v747 = vsel %vm745, %v730, %v732
    %v748 = vsel %vm745, %v734, %v736
    %v749 = vsel %vm745, %v736, %v738
    %v750 = vsel %vm745, %v740, %v742
    %v751 = vsel %vm745, %v742, %v744
    %v761 = vmin.f32 %v709, %v746
    %v762 = vmin.f32 %v710, %v747
    %v763 = vmin.f32 %v711, %v732
    %v764 = vmin.f32 %v712, %v748
    %v765 = vmin.f32 %v713, %v749
    %v766 = vmin.f32 %v714, %v738
    %v767 = vmin.f32 %v715, %v750
    %v768 = vmin.f32 %v716, %v751
    %v769 = vmin.f32 %v717, %v744
    %779 = vrot.lane.b32.xlu0 %v761, 124
    %v780 = vpop.permute.xlu0 %779
    %781 = vrot.lane.b32.xlu0 %v762, 124
    %v782 = vpop.permute.xlu0 %781
    %783 = vrot.lane.b32.xlu0 %v763, 124
    %v784 = vpop.permute.xlu0 %783
    %785 = vrot.lane.b32.xlu0 %v764, 124
    %v786 = vpop.permute.xlu0 %785
    %787 = vrot.lane.b32.xlu0 %v765, 124
    %v788 = vpop.permute.xlu0 %787
    %789 = vrot.lane.b32.xlu0 %v766, 124
    %v790 = vpop.permute.xlu0 %789
    %791 = vrot.lane.b32.xlu0 %v767, 124
    %v792 = vpop.permute.xlu0 %791
    %793 = vrot.lane.b32.xlu0 %v768, 124
    %v794 = vpop.permute.xlu0 %793
    %795 = vrot.lane.b32.xlu0 %v769, 124
    %v796 = vpop.permute.xlu0 %795
    %vm797 = vcmask 1014784
    %v798 = vsel %vm797, %v780, %v782
    %v799 = vsel %vm797, %v782, %v784
    %v800 = vsel %vm797, %v786, %v788
    %v801 = vsel %vm797, %v788, %v790
    %v802 = vsel %vm797, %v792, %v794
    %v803 = vsel %vm797, %v794, %v796
    %v813 = vmin.f32 %v761, %v798
    %v814 = vmin.f32 %v762, %v799
    %v815 = vmin.f32 %v763, %v784
    %v816 = vmin.f32 %v764, %v800
    %v817 = vmin.f32 %v765, %v801
    %v818 = vmin.f32 %v766, %v790
    %v819 = vmin.f32 %v767, %v802
    %v820 = vmin.f32 %v768, %v803
    %v821 = vmin.f32 %v769, %v796
    %831 = vrot.lane.b32.xlu0 %v813, 120
    %v832 = vpop.permute.xlu0 %831
    %833 = vrot.lane.b32.xlu0 %v814, 120
    %v834 = vpop.permute.xlu0 %833
    %835 = vrot.lane.b32.xlu0 %v815, 120
    %v836 = vpop.permute.xlu0 %835
    %837 = vrot.lane.b32.xlu0 %v816, 120
    %v838 = vpop.permute.xlu0 %837
    %839 = vrot.lane.b32.xlu0 %v817, 120
    %v840 = vpop.permute.xlu0 %839
    %841 = vrot.lane.b32.xlu0 %v818, 120
    %v842 = vpop.permute.xlu0 %841
    %843 = vrot.lane.b32.xlu0 %v819, 120
    %v844 = vpop.permute.xlu0 %843
    %845 = vrot.lane.b32.xlu0 %v820, 120
    %v846 = vpop.permute.xlu0 %845
    %847 = vrot.lane.b32.xlu0 %v821, 120
    %v848 = vpop.permute.xlu0 %847
    %vm849 = vcmask 982016
    %v850 = vsel %vm849, %v832, %v834
    %v851 = vsel %vm849, %v834, %v836
    %v852 = vsel %vm849, %v838, %v840
    %v853 = vsel %vm849, %v840, %v842
    %v854 = vsel %vm849, %v844, %v846
    %v855 = vsel %vm849, %v846, %v848
    %v865 = vmin.f32 %v813, %v850
    %v866 = vmin.f32 %v814, %v851
    %v867 = vmin.f32 %v815, %v836
    %v868 = vmin.f32 %v816, %v852
    %v869 = vmin.f32 %v817, %v853
    %v870 = vmin.f32 %v818, %v842
    %v871 = vmin.f32 %v819, %v854
    %v872 = vmin.f32 %v820, %v855
    %v873 = vmin.f32 %v821, %v848
    %883 = vrot.lane.b32.xlu0 %v865, 125
    %v884 = vpop.permute.xlu0 %883
    %885 = vrot.lane.b32.xlu0 %v866, 125
    %v886 = vpop.permute.xlu0 %885
    %887 = vrot.lane.b32.xlu0 %v867, 125
    %v888 = vpop.permute.xlu0 %887
    %889 = vrot.lane.b32.xlu0 %v868, 125
    %v890 = vpop.permute.xlu0 %889
    %891 = vrot.lane.b32.xlu0 %v869, 125
    %v892 = vpop.permute.xlu0 %891
    %893 = vrot.lane.b32.xlu0 %v870, 125
    %v894 = vpop.permute.xlu0 %893
    %895 = vrot.lane.b32.xlu0 %v871, 125
    %v896 = vpop.permute.xlu0 %895
    %897 = vrot.lane.b32.xlu0 %v872, 125
    %v898 = vpop.permute.xlu0 %897
    %899 = vrot.lane.b32.xlu0 %v873, 125
    %v900 = vpop.permute.xlu0 %899
    %vm901 = vcmask 1022976
    %v902 = vsel %vm901, %v884, %v886
    %v903 = vsel %vm901, %v886, %v888
    %v904 = vsel %vm901, %v890, %v892
    %v905 = vsel %vm901, %v892, %v894
    %v906 = vsel %vm901, %v896, %v898
    %v907 = vsel %vm901, %v898, %v900
    %v917 = vmin.f32 %v865, %v902
    %v918 = vmin.f32 %v866, %v903
    %v919 = vmin.f32 %v867, %v888
    %v920 = vmin.f32 %v868, %v904
    %v921 = vmin.f32 %v869, %v905
    %v922 = vmin.f32 %v870, %v894
    %v923 = vmin.f32 %v871, %v906
    %v924 = vmin.f32 %v872, %v907
    %v925 = vmin.f32 %v873, %v900
    %vm935 = vcmask 1041408
    %v936 = vrot.slane %v917, 6
    %v937 = vrot.slane %v920, 6
    %v938 = vsel %vm935, %v936, %v937
    %v939 = vrot.slane %v918, 6
    %v940 = vrot.slane %v921, 6
    %v941 = vsel %vm935, %v939, %v940
    %v942 = vrot.slane %v919, 6
    %v943 = vrot.slane %v922, 6
    %v944 = vsel %vm935, %v942, %v943
    %v945 = vrot.slane %v923, 6
    %v946 = vsel %vm935, %v937, %v945
    %v947 = vrot.slane %v924, 6
    %v948 = vsel %vm935, %v940, %v947
    %v949 = vrot.slane %v925, 6
    %v950 = vsel %vm935, %v943, %v949
    %960 = vst [vmem:[%s1] sm:$0xff] %v938
    %961 = vst [vmem:[%s1 + $0x8] sm:$0xff] %v941
    %962 = vst.msk [vmem:[%s1 + $0x10] sm:$0xff] %vm209, %v944
    %963 = vst [vmem:[%s1 + $0x18] sm:$0xff] %v946
    %964 = vst [vmem:[%s1 + $0x20] sm:$0xff] %v948
    %965 = vst.msk [vmem:[%s1 + $0x28] sm:$0xff] %vm209, %v950
    %966 = vst [vmem:[%s1 + $0x30] sm:$0x3] %v945
    %967 = vst [vmem:[%s1 + $0x38] sm:$0x3] %v947
    %vm968 = vcmask 107520
    %969 = vst.msk [vmem:[%s1 + $0x40] sm:$0x3] %vm968, %v949
    // Predicated region
    $region10: #{erosion.1} parent=1 // pred_check
      _
    $region11: #{erosion.1} parent=1 // pred_check_branch
      %971 = sbr.rel (0) target = $region13
    $region12: #{erosion.1} parent=1 // pred_region
      _
    $region13: #{erosion.1} parent=1 // pred_fallthru
      _
    // Predicated region
    $region14: #{erosion.1} parent=1 // pred_check
      _
    $region15: #{erosion.1} parent=1 // pred_check_branch
      %973 = sbr.rel (0) target = $region17
    $region16: #{erosion.1} parent=1 // pred_region
      _
    $region17: #{erosion.1} parent=1 // pred_fallthru
      _
    %974 = vsyncpa [#allocation4], 1

</llo_original>
